<compile_context>
chip_gen: v5e
topology: v5e:2x2
jax: 0.10.0
libtpu: 0.0.40
codegen_flags: <defaults>
</compile_context>

<pallas_src>
import jax
import jax.numpy as jnp
from jax import lax
from jax.experimental import pallas as pl
from jax.experimental.pallas import tpu as pltpu


def _softmax_lanes(scores):
    # scores: (Bt, L) f32 -> softmax along the lane (L) axis.
    m = jnp.max(scores, axis=-1, keepdims=True)
    e = jnp.exp(scores - m)
    denom = jnp.sum(e, axis=-1, keepdims=True)
    return e * pl.reciprocal(denom)  # exact reciprocal (EUP path)


# ---------------- kernels (one grid step per B_tile batch rows) ----------------

def _dot_kernel(h_ref, enc_ref, out_ref):
    h = h_ref[...]                                     # (Bt, H)
    enc = enc_ref[...]                                 # (Bt, L, H)
    # VPU multiply + XLU lane reduce (MXU would be ~empty at M=1 per row).
    scores = jnp.sum(h[:, None, :] * enc, axis=-1)     # (Bt, L)
    out_ref[...] = _softmax_lanes(scores).astype(out_ref.dtype)


def _general_kernel(h_ref, enc_ref, w_ref, b_ref, out_ref):
    h = h_ref[...]                                     # (Bt, H)
    enc = enc_ref[...]                                 # (Bt, L, H)
    # scores[b,l] = h[b] . (enc[b,l] @ W.T + bias) = (h @ W)[b] . enc[b,l] + h[b].bias
    q = jnp.dot(h, w_ref[...], preferred_element_type=jnp.float32)      # (Bt, H)
    c = jnp.sum(h * b_ref[...], axis=-1, keepdims=True)                  # (Bt, 1)
    scores = jnp.sum(q[:, None, :] * enc, axis=-1) + c                   # (Bt, L)
    out_ref[...] = _softmax_lanes(scores).astype(out_ref.dtype)


def _concat_kernel(h_ref, enc_ref, w1_ref, w2_ref, b_ref, v_ref, out_ref):
    Bt, L, H = enc_ref.shape
    h = h_ref[...]                                     # (Bt, H)
    enc = enc_ref[...]                                 # (Bt, L, H)
    # Linear(cat(h, enc)) = h @ W1.T + enc @ W2.T + bias, computed without
    # materializing any weight transpose (contract dim 1 of W on the MXU),
    # and with the encoder matmul batched over the whole (Bt*L, H) tile.
    hproj = lax.dot_general(h, w1_ref[...], (((1,), (1,)), ((), ())),
                            preferred_element_type=jnp.float32)          # (Bt, H)
    eproj = lax.dot_general(enc.reshape(Bt * L, H), w2_ref[...],
                            (((1,), (1,)), ((), ())),
                            preferred_element_type=jnp.float32)          # (Bt*L, H)
    energy = jnp.tanh(eproj.reshape(Bt, L, H) + hproj[:, None, :] + b_ref[...])
    scores = jnp.sum(energy * v_ref[...], axis=-1)                       # (Bt, L)
    out_ref[...] = _softmax_lanes(scores).astype(out_ref.dtype)


# ---------------- wrappers ----------------

def _pick_b_tile(B, L, H, itemsize=4):
    """Whole batch when small; otherwise a multiple of 8 that keeps the
    double-buffered encoder block well inside scoped VMEM (sized for the
    smaller v5e/v7x budgets) and leaves >=2 grid steps for v7x's 2 TCs."""
    if B <= 8:
        return B
    vmem_budget = 8 * 1024 * 1024
    per_row = 2 * L * H * itemsize            # x2 for input double-buffering
    cap = min(64, max(1, B // 2), max(8, vmem_budget // max(per_row, 1)))
    return max(8, (cap // 8) * 8)


def attn_forward_batch_major(method, hidden, encoder_outputs, params, b_tile=None):
    """hidden: (B, H); encoder_outputs: (B, L, H). Returns (B, 1, L) float32."""
    B, H = hidden.shape
    L = encoder_outputs.shape[1]
    Bt = b_tile or _pick_b_tile(B, L, H)
    grid = (pl.cdiv(B, Bt),)

    hid_spec = pl.BlockSpec((Bt, H), lambda i: (i, 0))
    enc_spec = pl.BlockSpec((Bt, L, H), lambda i: (i, 0, 0))
    out_spec = pl.BlockSpec((Bt, L), lambda i: (i, 0))          # lane-dense output
    out_shape = jax.ShapeDtypeStruct((B, L), jnp.float32)
    full = lambda shape: pl.BlockSpec(shape, lambda i: (0,) * len(shape))
    cparams = pltpu.CompilerParams(dimension_semantics=("parallel",))

    if method == "dot":
        probs = pl.pallas_call(
            _dot_kernel, out_shape=out_shape, grid=grid,
            in_specs=[hid_spec, enc_spec], out_specs=out_spec,
            compiler_params=cparams,
        )(hidden, encoder_outputs)
    elif method == "general":
        W, bias = params["W"], params["b"]
        probs = pl.pallas_call(
            _general_kernel, out_shape=out_shape, grid=grid,
            in_specs=[hid_spec, enc_spec, full((H, H)), full((1, H))],
            out_specs=out_spec, compiler_params=cparams,
        )(hidden, encoder_outputs, W, bias.reshape(1, H))
    elif method == "concat":
        W, bias, v = params["W"], params["b"], params["v"]       # W: (H, 2H)
        w1, w2 = W[:, :H], W[:, H:]                              # static slices, no transposes
        probs = pl.pallas_call(
            _concat_kernel, out_shape=out_shape, grid=grid,
            in_specs=[hid_spec, enc_spec, full((H, H)), full((H, H)),
                      full((1, H)), full((1, H))],
            out_specs=out_spec, compiler_params=cparams,
        )(hidden, encoder_outputs, w1, w2, bias.reshape(1, H), v.reshape(1, H))
    else:
        raise ValueError(method, "is not an appropriate attention method.")

    return probs[:, None, :]                                     # (B, 1, L)


def attn_forward(method, hidden, encoder_outputs, params, b_tile=None):
    """PyTorch layout: hidden (1, B, H), encoder_outputs (L, B, H) -> (B, 1, L).

    Callers that already hold batch-major (B, L, H) encoder outputs should call
    attn_forward_batch_major directly and skip this transpose (one full extra
    HBM round-trip of the encoder tensor)."""
    h2d = hidden[0]                                              # (B, H)
    enc = jnp.transpose(encoder_outputs, (1, 0, 2))              # (B, L, H)
    return attn_forward_batch_major(method, h2d, enc, params, b_tile=b_tile)


# ---------------- pure-JAX reference (mirrors the torch code) ----------------

def attn_reference(method, hidden, encoder_outputs, params):
    if method == "dot":
        scores = jnp.sum(hidden * encoder_outputs, axis=2)                 # (L, B)
    elif method == "general":
        energy = encoder_outputs @ params["W"].T + params["b"]
        scores = jnp.sum(hidden * energy, axis=2)
    elif method == "concat":
        L = encoder_outputs.shape[0]
        h_exp = jnp.broadcast_to(hidden, (L,) + hidden.shape[1:])
        cat = jnp.concatenate([h_exp, encoder_outputs], axis=2)
        energy = jnp.tanh(cat @ params["W"].T + params["b"])
        scores = jnp.sum(params["v"] * energy, axis=2)
    scores = scores.T                                                      # (B, L)
    return jax.nn.softmax(scores, axis=1)[:, None, :]                      # (B, 1, L)


if __name__ == "__main__":
    B, L, H = 2, 8, 32
    key = jax.random.PRNGKey(0)
    k_h, k_e, k_wg, k_bg, k_wc, k_bc, k_v = jax.random.split(key, 7)

    hidden = jax.random.normal(k_h, (1, B, H), dtype=jnp.float32)
    encoder_outputs = jax.random.normal(k_e, (L, B, H), dtype=jnp.float32)

    params_by_method = {
        "dot": {},
        "general": {
            "W": jax.random.normal(k_wg, (H, H), dtype=jnp.float32) * 0.1,
            "b": jax.random.normal(k_bg, (H,), dtype=jnp.float32) * 0.1,
        },
        "concat": {
            "W": jax.random.normal(k_wc, (H, 2 * H), dtype=jnp.float32) * 0.1,
            "b": jax.random.normal(k_bc, (H,), dtype=jnp.float32) * 0.1,
            "v": jax.random.normal(k_v, (H,), dtype=jnp.float32),
        },
    }

    for method in ("dot", "general", "concat"):
        params = params_by_method[method]
        out = attn_forward(method, hidden, encoder_outputs, params)
        out = jax.block_until_ready(out)
        ref = attn_reference(method, hidden, encoder_outputs, params)
        assert out.shape == (B, 1, L), (method, out.shape)
        assert jnp.allclose(out, ref, atol=1e-5, rtol=1e-5), method

    print("KERNEL_OK")
</pallas_src>

<mosaic_0001>
module attributes {stable_mosaic.version = 11 : i64} {
  func.func @_dot_kernel(%arg0: i32, %arg1: memref<2x32xf32, #tpu.memory_space<vmem>>, %arg2: memref<2x8x32xf32, #tpu.memory_space<vmem>>, %arg3: memref<2x8xf32, #tpu.memory_space<vmem>>) attributes {dimension_semantics = [#tpu.dimension_semantics<parallel>], iteration_bounds = array<i64: 1>, scalar_prefetch = 0 : i64, scratch_operands = 0 : i64, tpu.core_type = #tpu.core_type<tc>, window_params = [{transform_indices = @transform_0, window_bounds = array<i64: 2, 32>}, {transform_indices = @transform_1, window_bounds = array<i64: 2, 8, 32>}, {transform_indices = @transform_2, window_bounds = array<i64: 2, 8>}]} {
    %c0 = arith.constant 0 : index
    %c0_0 = arith.constant 0 : index
    %0 = vector.load %arg1[%c0, %c0_0] : memref<2x32xf32, #tpu.memory_space<vmem>>, vector<2x32xf32>
    %c0_1 = arith.constant 0 : index
    %c0_2 = arith.constant 0 : index
    %c0_3 = arith.constant 0 : index
    %1 = vector.load %arg2[%c0_1, %c0_2, %c0_3] : memref<2x8x32xf32, #tpu.memory_space<vmem>>, vector<2x8x32xf32>
    %2 = vector.shape_cast %0 : vector<2x32xf32> to vector<2x1x32xf32>
    %3 = vector.broadcast %2 : vector<2x1x32xf32> to vector<2x8x32xf32>
    %4 = arith.mulf %3, %1 : vector<2x8x32xf32>
    %cst = arith.constant dense<0.000000e+00> : vector<2x8xf32>
    %5 = vector.multi_reduction <add>, %4, %cst [2] : vector<2x8x32xf32> to vector<2x8xf32>
    %cst_4 = arith.constant dense<0xFF800000> : vector<2xf32>
    %6 = vector.multi_reduction <maximumf>, %5, %cst_4 [1] : vector<2x8xf32> to vector<2xf32>
    %7 = vector.shape_cast %6 : vector<2xf32> to vector<2x1xf32>
    %8 = vector.broadcast %7 : vector<2x1xf32> to vector<2x8xf32>
    %9 = arith.subf %5, %8 : vector<2x8xf32>
    %10 = math.exp %9 : vector<2x8xf32>
    %cst_5 = arith.constant dense<0.000000e+00> : vector<2xf32>
    %11 = vector.multi_reduction <add>, %10, %cst_5 [1] : vector<2x8xf32> to vector<2xf32>
    %12 = vector.shape_cast %11 : vector<2xf32> to vector<2x1xf32>
    %13 = tpu.reciprocal %12 : vector<2x1xf32> -> vector<2x1xf32>
    %14 = vector.broadcast %13 : vector<2x1xf32> to vector<2x8xf32>
    %15 = arith.mulf %10, %14 : vector<2x8xf32>
    %c0_6 = arith.constant 0 : index
    %c0_7 = arith.constant 0 : index
    %16 = vector.load %arg3[%c0_6, %c0_7] : memref<2x8xf32, #tpu.memory_space<vmem>>, vector<2x8xf32>
    tpu.vector_store %arg3[%c0_6, %c0_7], %15 {strides = array<i32>} : memref<2x8xf32, #tpu.memory_space<vmem>>, vector<2x8xf32>,
    return
  }
  func.func @transform_0(%arg0: i32) -> (i32, i32) {
    %c0_i32 = arith.constant 0 : i32
    %c0_i32_0 = arith.constant 0 : i32
    return %arg0, %c0_i32 : i32, i32
  }
  func.func @transform_1(%arg0: i32) -> (i32, i32, i32) {
    %c0_i32 = arith.constant 0 : i32
    %c0_i32_0 = arith.constant 0 : i32
    %c0_i32_1 = arith.constant 0 : i32
    return %arg0, %c0_i32, %c0_i32_0 : i32, i32, i32
  }
  func.func @transform_2(%arg0: i32) -> (i32, i32) {
    %c0_i32 = arith.constant 0 : i32
    %c0_i32_0 = arith.constant 0 : i32
    return %arg0, %c0_i32 : i32, i32
  }
}

</mosaic_0001>

<llo_original>
// kernel: tpu_custom_call.1
$region0: #{tpu_custom_call.1}
  #allocation0 [shape = 'u32[]', space=smem, size = 0x4, offset = 0x4, fixed_abs, tag = 'smem constant byte address 0x4 - core index']
  #allocation1 [shape = 'u32[72,128]{1,0:T(1,128)}', space=vmem, size = 0x9000, scoped, tag = 'internal scratch']
  %s0 = inlined_call_operand.hbm [shape: f32[2,32], index: 0, kind: input, shape index: {}]
  %s1 = inlined_call_operand.hbm [shape: f32[2,8,32], index: 1, kind: input, shape index: {}]
  %s2 = inlined_call_operand.hbm [shape: f32[2,8], index: 2, kind: output, shape index: {}]
  %s3 = sld [smem:[#allocation0]]
  $region26: #{tpu_custom_call.1} parent=0
    _
  %s5 = ssub.s32 1, %s3
  %s6 = scalar_select 0, %s5, %s3
  $region1: #{tpu_custom_call.1} parent=0
    #allocation2 [shape = 'u8[1024]{0}', space=vmem, size = 0x400, scoped, tag = 'input window, operand 0, single buffered']
    #allocation3 [shape = 's32[1]{0}', space=sflag, size = 0x4, scoped, tag = 'scoped memory for tpu_custom_call.1']
    #allocation4 [shape = 's32[1]{0}', space=sflag, size = 0x4, scoped, tag = 'scoped memory for tpu_custom_call.1']
    #allocation5 [shape = 'u8[8192]{0}', space=vmem, size = 0x2000, scoped, tag = 'input window, operand 1, single buffered']
    #allocation6 [shape = 's32[1]{0}', space=sflag, size = 0x4, scoped, tag = 'scoped memory for tpu_custom_call.1']
    #allocation7 [shape = 'u8[1024]{0}', space=vmem, size = 0x400, scoped, tag = 'output window, operand 0, single buffered']
    %7 = vsyncpa [#allocation3], 0
    %8 = vsyncpa [#allocation6], 0
    %9 = vsyncpa [#allocation4], 0
    // Predicated region
    $region2: #{tpu_custom_call.1} parent=1 // pred_check
      _
    $region3: #{tpu_custom_call.1} parent=1 // pred_check_branch
      %11 = sbr.rel (0) target = $region5
    $region4: #{tpu_custom_call.1} parent=1 // pred_region
      %13 = vsyncadd [#allocation3], 0
      %s15 = sshll.u32 %s0, 4
      %s16 = int_to_ptr.hbm [resolvable:$true] %s15
      %s17 = sshll.u32 [#allocation2], 4
      %s18 = int_to_ptr.vmem [resolvable:$true] %s17
      %20 = dma.hbm_to_vmem [thread:$0]  %s16, 32, %s18, [#allocation3]
    $region5: #{tpu_custom_call.1} parent=1 // pred_fallthru
      _
    // Predicated region
    $region6: #{tpu_custom_call.1} parent=1 // pred_check
      _
    $region7: #{tpu_custom_call.1} parent=1 // pred_check_branch
      %22 = sbr.rel (0) target = $region9
    $region8: #{tpu_custom_call.1} parent=1 // pred_region
      %24 = vsyncadd [#allocation6], 0
      %s25 = sshll.u32 %s1, 4
      %s26 = int_to_ptr.hbm [resolvable:$true] %s25
      %s27 = sshll.u32 [#allocation5], 4
      %s28 = int_to_ptr.vmem [resolvable:$true] %s27
      %33 = dma.hbm_to_vmem [thread:$0]  %s26, 256, %s28, [#allocation6], 128, 128, 8
    $region9: #{tpu_custom_call.1} parent=1 // pred_fallthru
      _
    // Predicated region
    $region10: #{tpu_custom_call.1} parent=1 // pred_check
      _
    $region11: #{tpu_custom_call.1} parent=1 // pred_check_branch
      %35 = sbr.rel (0) target = $region13
    $region12: #{tpu_custom_call.1} parent=1 // pred_region
      %37 = dma.done [#allocation3], 32
    $region13: #{tpu_custom_call.1} parent=1 // pred_fallthru
      _
    // Predicated region
    $region14: #{tpu_custom_call.1} parent=1 // pred_check
      _
    $region15: #{tpu_custom_call.1} parent=1 // pred_check_branch
      %39 = sbr.rel (0) target = $region17
    $region16: #{tpu_custom_call.1} parent=1 // pred_region
      %41 = dma.done [#allocation6], 256
    $region17: #{tpu_custom_call.1} parent=1 // pred_fallthru
      _
    %v42 = vld [vmem:[#allocation2] sm:$0x3]
    %v43 = vld [vmem:[#allocation5] sm:$0xff]
    %v44 = vld [vmem:[#allocation5 + $0x8] sm:$0xff]
    %v46 = vrot.slane %v42, 1
    %v47 = vperm.slane %v42, 0
    %v48 = vperm.slane %v46, 0
    %v51 = vmul.f32 %v47, %v43
    %v52 = vmul.f32 %v48, %v44
    %vm53 = vcmask 261120
    %v54 = vsel %vm53, %v51, 0.0
    %55 = vadd.xlane.f32.xlu0 %v54
    %v56 = vpop.xlane.xlu0 %55
    %v57 = vsel %vm53, %v52, 0.0
    %58 = vadd.xlane.f32.xlu0 %v57
    %v59 = vpop.xlane.xlu0 %58
    %v62 = vlaneseq
    %v63 = vand.u32 %v62, 127
    %v64 = vperm.slane %v56, %v63
    %v65 = vperm.slane %v59, %v63
    %vm66 = vcmask 1041409
    %v67 = vsel %vm66, %v65, %v64
    %vm69 = vcmask 58368
    %v70 = vsel %vm69, %v67, -inf
    %71 = vmax.xlane.f32.xlu0 %v70
    %v72 = vpop.xlane.xlu0 %71
    %v74 = vperm.slane %v72, 0
    %v75 = vperm.slane %v72, 1
    %v78 = vsub.f32 %v56, %v74
    %v79 = vsub.f32 %v59, %v75
    %v80 = vmul.f32 %v78, 1.442695
    %v81 = vpow.pop %v80
    %v82 = vmul.f32 %v79, 1.442695
    %v83 = vpow.pop %v82
    %86 = vset.pattern.permute.xlu0 0
    %87 = vperm.xlu0 %86, %v81
    %v88 = vpop.permute.xlu0 %87
    %89 = vset.pattern.permute.xlu0 0
    %90 = vperm.xlu0 %89, %v83
    %v91 = vpop.permute.xlu0 %90
    %v92 = vperm.slane %v88, %v63
    %v93 = vperm.slane %v91, %v63
    %v94 = vsel %vm66, %v93, %v92
    %v96 = vsel %vm69, %v94, 0.0
    %97 = vadd.xlane.f32.xlu0 %v96
    %v98 = vpop.xlane.xlu0 %97
    %v99 = vrcp.pop %v98
    %v100 = vmul.f32 %v98, %v99
    %v101 = vsub.f32 1.0, %v100
    %v102 = vmul.f32 %v99, %v101
    %v103 = vadd.f32 %v99, %v102
    %vm104 = vweird.f32 %v98
    %vm105 = vweird.f32 %v99
    %vm106 = vmor %vm104, %vm105
    %v107 = vsel %vm106, %v99, %v103
    %v108 = vand.u32 2147483647, %v98
    %vm109 = vcmp.eq.f32.partialorder %v108, 8.507059e+37
    %v110 = vand.u32 %v98, 2147483648
    %v111 = vor.u32 1.1754944e-38, %v110
    %v112 = vsel %vm109, %v111, %v107
    %v114 = vperm.slane %v112, 0
    %v115 = vperm.slane %v112, 1
    %v118 = vmul.f32 %v81, %v114
    %v119 = vmul.f32 %v83, %v115
    %122 = vset.pattern.permute.xlu0 0
    %123 = vperm.xlu0 %122, %v118
    %v124 = vpop.permute.xlu0 %123
    %125 = vset.pattern.permute.xlu0 0
    %126 = vperm.xlu0 %125, %v119
    %v127 = vpop.permute.xlu0 %126
    %v128 = vperm.slane %v124, %v63
    %v129 = vperm.slane %v127, %v63
    %v130 = vsel %vm66, %v129, %v128
    %132 = vst.msk [vmem:[#allocation7] sm:$0x3] %vm69, %v130
    // Predicated region
    $region18: #{tpu_custom_call.1} parent=1 // pred_check
      _
    $region19: #{tpu_custom_call.1} parent=1 // pred_check_branch
      %134 = sbr.rel (0) target = $region21
    $region20: #{tpu_custom_call.1} parent=1 // pred_region
      %136 = vsyncadd [#allocation4], 0
      %s138 = sshll.u32 [#allocation7], 4
      %s139 = int_to_ptr.vmem [resolvable:$true] %s138
      %s140 = sshll.u32 %s2, 4
      %s141 = int_to_ptr.hbm [resolvable:$true] %s140
      %143 = dma.vmem_to_hbm [thread:$0]  %s139, 32, %s141, [#allocation4]
    $region21: #{tpu_custom_call.1} parent=1 // pred_fallthru
      _
    // Predicated region
    $region22: #{tpu_custom_call.1} parent=1 // pred_check
      _
    $region23: #{tpu_custom_call.1} parent=1 // pred_check_branch
      %145 = sbr.rel (0) target = $region25
    $region24: #{tpu_custom_call.1} parent=1 // pred_region
      %147 = dma.done [#allocation4], 32
    $region25: #{tpu_custom_call.1} parent=1 // pred_fallthru
      _
    %148 = vsyncpa [#allocation3], 1
    %149 = vsyncpa [#allocation6], 1
    %150 = vsyncpa [#allocation4], 1

</llo_original>
